<compile_context>
chip_gen: v5e
topology: v5e:2x2
jax: 0.10.0
libtpu: 0.0.40
codegen_flags: <defaults>
</compile_context>

<pallas_src>
import functools

import jax
import jax.numpy as jnp
import numpy as np
from jax.experimental import pallas as pl
from jax.experimental.pallas import tpu as pltpu


# ----------------------------- Pallas kernel -------------------------------- #

def _pool2x2_kernel(x_ref, s_ref, m_ref, o_ref, *, w):
    """2x2 max pool on a lane-dense slab of folded pooling row-groups.

    x_ref: (rblk, L)   L = g*stride*w; each row packs g groups of `stride`
                       consecutive image rows of width w (contiguous in HBM).
    s_ref: (L, Lo)     {0,1} one-hot selection matrix, Lo = g*wo.
    m_ref: (1, L)      1.0 at window-anchor lanes (l % stride == 0 and
                       l % (stride*w) < w), 0.0 elsewhere.
    o_ref: (rblk, Lo)  pooled outputs, lane-dense packed.
    """
    x = x_ref[...]                                         # (rblk, L)
    L = x.shape[-1]

    # Vertical max: the bottom row of each 2x2 window is `w` lanes to the
    # right of the top row inside the same group (jnp.roll semantics:
    # roll(x, L-w)[l] == x[l+w]).  One XLU rotation, whole vregs on the VPU.
    t = jnp.maximum(x, pltpu.roll(x, shift=L - w, axis=1))

    # Horizontal max: the right column of the window is 1 lane to the right.
    p = jnp.maximum(t, pltpu.roll(t, shift=L - 1, axis=1))

    # Zero every lane that is not a window anchor so inf/NaN living in unused
    # lanes cannot contaminate the zero-weighted terms of the gather below.
    mask = jnp.broadcast_to(m_ref[...], p.shape)           # cheap sublane bcast
    p = jnp.where(mask != 0, p, jnp.zeros_like(p))

    # Lane compaction: one-hot gather on the MXU.  Each output element is a
    # single p value * 1.0 accumulated in f32 -> exact selection.
    o_ref[...] = jnp.dot(p, s_ref[...],
                         preferred_element_type=jnp.float32).astype(o_ref.dtype)


# ------------------------------ wrapper ------------------------------------- #

def _round_up(v, m):
    return (v + m - 1) // m * m


def _pick_fold(R, base, target=512, lane=128):
    """Largest divisor g of R with g*base <= target, preferring lane-aligned."""
    hi = min(R, max(1, target // base))
    cands = [g for g in range(1, hi + 1) if R % g == 0]
    if not cands:
        return 1
    return max(cands, key=lambda g: ((g * base) % lane == 0, g * base))


def _block_rows(Rg, L, Lo, itemsize):
    """Row-block size from (8,128)-padded bytes; >=8 steps for big tensors."""
    sub = {4: 8, 2: 16, 1: 32}.get(itemsize, 8)            # sublane multiple
    in_row = _round_up(L, 128) * itemsize
    out_row = _round_up(Lo, 128) * itemsize
    # ~6 MiB per (in+out) block pair -> ~12 MiB double-buffered (fits every
    # generation's scoped VMEM once we raise the limit to 32 MiB below).
    rows = max(sub, (6 * 1024 * 1024) // (in_row + out_row))
    if Rg * in_row > (1 << 20):
        # Never run a >1 MiB tensor as a single grid step: keep >=~8 steps so
        # v7x's two TensorCores share the work and DMAs overlap compute.
        rows = min(rows, max(sub, -(-Rg // 8)))
    if rows >= Rg:
        return Rg                                          # full-dim block is legal
    return max(sub, rows // sub * sub)


def set_max_pool2d(x, stride):
    """Pallas implementation of SetMaxPool2d.forward (kernel_size=2)."""
    b, n, c, h, w = x.shape
    s = int(stride)
    # The module's final .view() is only valid when the pooled sizes equal
    # h//stride and w//stride, i.e. stride >= 2 and stride | h, stride | w.
    assert s >= 2 and h % s == 0 and w % s == 0, (
        "SetMaxPool2d requires stride >= 2 dividing h and w (otherwise the "
        "torch .view() in the reference module is itself invalid).")
    ho, wo = h // s, w // s
    R = b * n * c * ho                                     # pooling row-groups
    base = s * w                                           # elems per group

    dt = x.dtype
    itemsize = jnp.dtype(dt).itemsize

    g = _pick_fold(R, base)                                # groups per slab row
    Rg = R // g
    L = g * base                                           # input lanes / row
    Lo = g * wo                                            # output lanes / row

    rblk = _block_rows(Rg, L, Lo, itemsize)
    grid = (pl.cdiv(Rg, rblk),)

    # One-hot selection matrix + window-anchor mask (tiny, built on device,
    # resident in VMEM: their block index is constant across the grid).
    lane = jnp.arange(L, dtype=jnp.int32)
    outl = jnp.arange(Lo, dtype=jnp.int32)
    sel = (outl // wo) * base + (outl % wo) * s            # anchor lane per output
    S = (lane[:, None] == sel[None, :]).astype(dt)         # (L, Lo)
    mask = (((lane % s) == 0) & ((lane % base) < w)).astype(jnp.float32)[None, :]

    # Free reshape: each slab row = g*stride consecutive image rows.
    x2 = x.reshape(Rg, L)

    out = pl.pallas_call(
        functools.partial(_pool2x2_kernel, w=w),
        out_shape=jax.ShapeDtypeStruct((Rg, Lo), dt),
        grid=grid,
        in_specs=[
            pl.BlockSpec((rblk, L), lambda i: (i, 0)),     # data slab
            pl.BlockSpec((L, Lo), lambda i: (0, 0)),       # one-hot S (resident)
            pl.BlockSpec((1, L), lambda i: (0, 0)),        # anchor mask (resident)
        ],
        out_specs=pl.BlockSpec((rblk, Lo), lambda i: (i, 0)),
        compiler_params=pltpu.CompilerParams(
            dimension_semantics=("parallel",),
            vmem_limit_bytes=32 * 1024 * 1024),
    )(x2, S, mask)

    # Free reshape back to the module's output layout.
    return out.reshape(b, n, c, ho, wo)


# ------------------------- pure-JAX reference (check) ------------------------ #

def reference_set_max_pool2d(x, stride):
    b, n, c, h, w = x.shape
    xf = x.reshape(b * n, c, h, w)
    y = jax.lax.reduce_window(
        xf, -jnp.inf, jax.lax.max,
        window_dimensions=(1, 1, 2, 2),
        window_strides=(1, 1, stride, stride),
        padding="VALID")
    return y.reshape(b, n, c, h // stride, w // stride)


# ----------------------------------- main ------------------------------------ #

def _check(key, shape, stride):
    # Integer-valued test data keeps the comparison exact regardless of the
    # MXU's f32 accumulation mode (pooling is pure selection).
    x = jax.random.randint(key, shape, -512, 512).astype(jnp.float32)
    fwd = jax.jit(functools.partial(set_max_pool2d, stride=stride))
    out = jax.block_until_ready(fwd(x))
    ref = jax.block_until_ready(reference_set_max_pool2d(x, stride))
    b, n, c, h, w = shape
    assert out.shape == (b, n, c, h // stride, w // stride), out.shape
    np.testing.assert_array_equal(np.asarray(out), np.asarray(ref))


if __name__ == "__main__":
    key = jax.random.PRNGKey(0)
    k0, k1, k2 = jax.random.split(key, 3)

    # Small primary case (single grid step, fully lane-dense in/out).
    _check(k0, (2, 4, 4, 16, 16), stride=2)
    # Larger case exercising the multi-step ("parallel") tiled path.
    _check(k1, (2, 2, 16, 128, 128), stride=2)
    # stride > 2 path.
    _check(k2, (1, 2, 8, 32, 32), stride=4)

    print("KERNEL_OK")
</pallas_src>

<mosaic_0001>
module attributes {stable_mosaic.version = 11 : i64} {
  func.func @_pool2x2_kernel(%arg0: i32, %arg1: memref<16x512xf32, #tpu.memory_space<vmem>>, %arg2: memref<512x128xf32, #tpu.memory_space<vmem>>, %arg3: memref<1x512xf32, #tpu.memory_space<vmem>>, %arg4: memref<16x128xf32, #tpu.memory_space<vmem>>) attributes {dimension_semantics = [#tpu.dimension_semantics<parallel>], iteration_bounds = array<i64: 1>, scalar_prefetch = 0 : i64, scratch_operands = 0 : i64, tpu.core_type = #tpu.core_type<tc>, window_params = [{transform_indices = @transform_0, window_bounds = array<i64: 16, 512>}, {pipeline_mode = #tpu.pipeline_mode<synchronous>, transform_indices = @transform_1, window_bounds = array<i64: 512, 128>}, {pipeline_mode = #tpu.pipeline_mode<synchronous>, transform_indices = @transform_2, window_bounds = array<i64: 1, 512>}, {transform_indices = @transform_3, window_bounds = array<i64: 16, 128>}]} {
    %c0 = arith.constant 0 : index
    %c0_0 = arith.constant 0 : index
    %0 = vector.load %arg1[%c0, %c0_0] : memref<16x512xf32, #tpu.memory_space<vmem>>, vector<16x512xf32>
    %c496_i32 = arith.constant 496 : i32
    %1 = tpu.dynamic_rotate %0 by %c496_i32 dim 1 : vector<16x512xf32>, i32 -> vector<16x512xf32>
    %2 = arith.maximumf %0, %1 : vector<16x512xf32>
    %c511_i32 = arith.constant 511 : i32
    %3 = tpu.dynamic_rotate %2 by %c511_i32 dim 1 : vector<16x512xf32>, i32 -> vector<16x512xf32>
    %4 = arith.maximumf %2, %3 : vector<16x512xf32>
    %c0_1 = arith.constant 0 : index
    %c0_2 = arith.constant 0 : index
    %5 = vector.load %arg3[%c0_1, %c0_2] : memref<1x512xf32, #tpu.memory_space<vmem>>, vector<1x512xf32>
    %6 = vector.shape_cast %5 : vector<1x512xf32> to vector<1x512xf32>
    %7 = vector.broadcast %6 : vector<1x512xf32> to vector<16x512xf32>
    %cst = arith.constant 0.000000e+00 : f32
    %8 = vector.broadcast %cst : f32 to vector<16x512xf32>
    %9 = arith.cmpf one, %7, %8 : vector<16x512xf32>
    %cst_3 = arith.constant 0.000000e+00 : f32
    %10 = vector.broadcast %cst_3 : f32 to vector<16x512xf32>
    %11 = arith.select %9, %4, %10 : vector<16x512xi1>, vector<16x512xf32>
    %c0_4 = arith.constant 0 : index
    %c0_5 = arith.constant 0 : index
    %12 = vector.load %arg2[%c0_4, %c0_5] : memref<512x128xf32, #tpu.memory_space<vmem>>, vector<512x128xf32>
    %cst_6 = arith.constant dense<0.000000e+00> : vector<16x128xf32>
    %13 = tpu.matmul %11, %12, %cst_6 {dimension_numbers = #tpu.dot_dimension_numbers<[1], [0], [0], [1], [0, 0, 1, 1], [], []>} : vector<16x512xf32>, vector<512x128xf32>, vector<16x128xf32> -> vector<16x128xf32>
    %c0_7 = arith.constant 0 : index
    %c0_8 = arith.constant 0 : index
    %14 = vector.load %arg4[%c0_7, %c0_8] : memref<16x128xf32, #tpu.memory_space<vmem>>, vector<16x128xf32>
    tpu.vector_store %arg4[%c0_7, %c0_8], %13 {strides = array<i32>} : memref<16x128xf32, #tpu.memory_space<vmem>>, vector<16x128xf32>,
    return
  }
  func.func @transform_0(%arg0: i32) -> (i32, i32) {
    %c0_i32 = arith.constant 0 : i32
    %c0_i32_0 = arith.constant 0 : i32
    return %arg0, %c0_i32 : i32, i32
  }
  func.func @transform_1(%arg0: i32) -> (i32, i32) {
    %c0_i32 = arith.constant 0 : i32
    %c0_i32_0 = arith.constant 0 : i32
    %c0_i32_1 = arith.constant 0 : i32
    return %c0_i32, %c0_i32_0 : i32, i32
  }
  func.func @transform_2(%arg0: i32) -> (i32, i32) {
    %c0_i32 = arith.constant 0 : i32
    %c0_i32_0 = arith.constant 0 : i32
    %c0_i32_1 = arith.constant 0 : i32
    return %c0_i32, %c0_i32_0 : i32, i32
  }
  func.func @transform_3(%arg0: i32) -> (i32, i32) {
    %c0_i32 = arith.constant 0 : i32
    %c0_i32_0 = arith.constant 0 : i32
    return %arg0, %c0_i32 : i32, i32
  }
}

</mosaic_0001>

<llo_original>
// kernel: set_max_pool2d.1
$region0: #{set_max_pool2d.1}
  #allocation0 [shape = 'u32[]', space=smem, size = 0x4, offset = 0x4, fixed_abs, tag = 'smem constant byte address 0x4 - core index']
  #allocation1 [shape = 'u32[72,128]{1,0:T(1,128)}', space=vmem, size = 0x9000, scoped, tag = 'internal scratch']
  %s0 = inlined_call_operand.vmem [shape: f32[16,512], index: 0, kind: input, shape index: {}]
  %s1 = inlined_call_operand.vmem [shape: f32[512,128], index: 1, kind: input, shape index: {}]
  %s2 = inlined_call_operand.vmem [shape: f32[1,512], index: 2, kind: input, shape index: {}]
  %s3 = inlined_call_operand.vmem [shape: f32[16,128], index: 3, kind: output, shape index: {}]
  %s4 = sld [smem:[#allocation0]]
  $region22: #{set_max_pool2d.1} parent=0
    _
  %s6 = ssub.s32 1, %s4
  %s7 = scalar_select 0, %s6, %s4
  // Predicated region
  $region2: #{set_max_pool2d.1} parent=0 // pred_check
    _
  $region3: #{set_max_pool2d.1} parent=0 // pred_check_branch
    %9 = sbr.rel (0) target = $region5
  $region4: #{set_max_pool2d.1} parent=0 // pred_region
    _
  $region5: #{set_max_pool2d.1} parent=0 // pred_fallthru
    _
  // Predicated region
  $region6: #{set_max_pool2d.1} parent=0 // pred_check
    _
  $region7: #{set_max_pool2d.1} parent=0 // pred_check_branch
    %11 = sbr.rel (0) target = $region9
  $region8: #{set_max_pool2d.1} parent=0 // pred_region
    _
  $region9: #{set_max_pool2d.1} parent=0 // pred_fallthru
    _
  // Predicated region
  $region10: #{set_max_pool2d.1} parent=0 // pred_check
    _
  $region11: #{set_max_pool2d.1} parent=0 // pred_check_branch
    %13 = sbr.rel (0) target = $region13
  $region12: #{set_max_pool2d.1} parent=0 // pred_region
    _
  $region13: #{set_max_pool2d.1} parent=0 // pred_fallthru
    _
  %v14 = vld [vmem:[%s0] sm:$0xff]
  %v15 = vld [vmem:[%s0 + $0x8] sm:$0xff]
  %v16 = vld [vmem:[%s0 + $0x10] sm:$0xff]
  %v17 = vld [vmem:[%s0 + $0x18] sm:$0xff]
  %v18 = vld [vmem:[%s0 + $0x20] sm:$0xff]
  %v19 = vld [vmem:[%s0 + $0x28] sm:$0xff]
  %v20 = vld [vmem:[%s0 + $0x30] sm:$0xff]
  %v21 = vld [vmem:[%s0 + $0x38] sm:$0xff]
  %22 = vrot.lane.b32.xlu0 %v14, 112
  %v23 = vpop.permute.xlu0 %22
  %24 = vrot.lane.b32.xlu0 %v18, 112
  %v25 = vpop.permute.xlu0 %24
  %26 = vrot.lane.b32.xlu0 %v15, 112
  %v27 = vpop.permute.xlu0 %26
  %28 = vrot.lane.b32.xlu0 %v19, 112
  %v29 = vpop.permute.xlu0 %28
  %30 = vrot.lane.b32.xlu0 %v16, 112
  %v31 = vpop.permute.xlu0 %30
  %32 = vrot.lane.b32.xlu0 %v20, 112
  %v33 = vpop.permute.xlu0 %32
  %34 = vrot.lane.b32.xlu0 %v17, 112
  %v35 = vpop.permute.xlu0 %34
  %36 = vrot.lane.b32.xlu0 %v21, 112
  %v37 = vpop.permute.xlu0 %36
  %v38 = vlaneseq
  %v39 = vand.u32 %v38, 127
  %vm40 = vcmp.lt.s32.totalorder %v39, 112
  %v41 = vsel %vm40, %v31, %v35
  %v42 = vsel %vm40, %v33, %v37
  %v43 = vsel %vm40, %v27, %v31
  %v44 = vsel %vm40, %v29, %v33
  %v45 = vsel %vm40, %v23, %v27
  %v46 = vsel %vm40, %v25, %v29
  %v47 = vsel %vm40, %v35, %v23
  %v48 = vsel %vm40, %v37, %v25
  %v49 = vmax.f32 %v14, %v45
  %v50 = vmax.f32 %v15, %v43
  %v51 = vmax.f32 %v16, %v41
  %v52 = vmax.f32 %v17, %v47
  %v53 = vmax.f32 %v18, %v46
  %v54 = vmax.f32 %v19, %v44
  %v55 = vmax.f32 %v20, %v42
  %v56 = vmax.f32 %v21, %v48
  %57 = vrot.lane.b32.xlu0 %v49, 127
  %v58 = vpop.permute.xlu0 %57
  %59 = vrot.lane.b32.xlu0 %v53, 127
  %v60 = vpop.permute.xlu0 %59
  %61 = vrot.lane.b32.xlu0 %v50, 127
  %v62 = vpop.permute.xlu0 %61
  %63 = vrot.lane.b32.xlu0 %v54, 127
  %v64 = vpop.permute.xlu0 %63
  %65 = vrot.lane.b32.xlu0 %v51, 127
  %v66 = vpop.permute.xlu0 %65
  %67 = vrot.lane.b32.xlu0 %v55, 127
  %v68 = vpop.permute.xlu0 %67
  %69 = vrot.lane.b32.xlu0 %v52, 127
  %v70 = vpop.permute.xlu0 %69
  %71 = vrot.lane.b32.xlu0 %v56, 127
  %v72 = vpop.permute.xlu0 %71
  %vm73 = vcmp.lt.s32.totalorder %v39, 127
  %v74 = vsel %vm73, %v66, %v70
  %v75 = vsel %vm73, %v68, %v72
  %v76 = vsel %vm73, %v62, %v66
  %v77 = vsel %vm73, %v64, %v68
  %v78 = vsel %vm73, %v58, %v62
  %v79 = vsel %vm73, %v60, %v64
  %v80 = vsel %vm73, %v70, %v58
  %v81 = vsel %vm73, %v72, %v60
  %v82 = vmax.f32 %v49, %v78
  %v83 = vmax.f32 %v50, %v76
  %v84 = vmax.f32 %v51, %v74
  %v85 = vmax.f32 %v52, %v80
  %v86 = vmax.f32 %v53, %v79
  %v87 = vmax.f32 %v54, %v77
  %v88 = vmax.f32 %v55, %v75
  %v89 = vmax.f32 %v56, %v81
  %v90 = vld [vmem:[%s2] sm:$0xf]
  %v92 = vperm.slane %v90, 0
  %v93 = vperm.slane %v90, 1
  %v94 = vperm.slane %v90, 2
  %v95 = vperm.slane %v90, 3
  %vm100 = vcmp.ne.f32.partialorder %v92, 0.0
  %vm101 = vcmp.ne.f32.partialorder %v93, 0.0
  %vm102 = vcmp.ne.f32.partialorder %v94, 0.0
  %vm103 = vcmp.ne.f32.partialorder %v95, 0.0
  %v104 = vsel %vm100, %v82, 0.0
  %v105 = vsel %vm101, %v83, 0.0
  %v106 = vsel %vm102, %v84, 0.0
  %v107 = vsel %vm103, %v85, 0.0
  %v108 = vsel %vm100, %v86, 0.0
  %v109 = vsel %vm101, %v87, 0.0
  %v110 = vsel %vm102, %v88, 0.0
  %v111 = vsel %vm103, %v89, 0.0
  %v112 = vld [vmem:[%s1] sm:$0xff]
  %v113 = vld [vmem:[%s1 + $0x8] sm:$0xff]
  %v114 = vld [vmem:[%s1 + $0x10] sm:$0xff]
  %v115 = vld [vmem:[%s1 + $0x18] sm:$0xff]
  %v116 = vld [vmem:[%s1 + $0x20] sm:$0xff]
  %v117 = vld [vmem:[%s1 + $0x28] sm:$0xff]
  %v118 = vld [vmem:[%s1 + $0x30] sm:$0xff]
  %v119 = vld [vmem:[%s1 + $0x38] sm:$0xff]
  %v120 = vld [vmem:[%s1 + $0x40] sm:$0xff]
  %v121 = vld [vmem:[%s1 + $0x48] sm:$0xff]
  %v122 = vld [vmem:[%s1 + $0x50] sm:$0xff]
  %v123 = vld [vmem:[%s1 + $0x58] sm:$0xff]
  %v124 = vld [vmem:[%s1 + $0x60] sm:$0xff]
  %v125 = vld [vmem:[%s1 + $0x68] sm:$0xff]
  %v126 = vld [vmem:[%s1 + $0x70] sm:$0xff]
  %v127 = vld [vmem:[%s1 + $0x78] sm:$0xff]
  %v128 = vld [vmem:[%s1 + $0x80] sm:$0xff]
  %v129 = vld [vmem:[%s1 + $0x88] sm:$0xff]
  %v130 = vld [vmem:[%s1 + $0x90] sm:$0xff]
  %v131 = vld [vmem:[%s1 + $0x98] sm:$0xff]
  %v132 = vld [vmem:[%s1 + $0xa0] sm:$0xff]
  %v133 = vld [vmem:[%s1 + $0xa8] sm:$0xff]
  %v134 = vld [vmem:[%s1 + $0xb0] sm:$0xff]
  %v135 = vld [vmem:[%s1 + $0xb8] sm:$0xff]
  %v136 = vld [vmem:[%s1 + $0xc0] sm:$0xff]
  %v137 = vld [vmem:[%s1 + $0xc8] sm:$0xff]
  %v138 = vld [vmem:[%s1 + $0xd0] sm:$0xff]
  %v139 = vld [vmem:[%s1 + $0xd8] sm:$0xff]
  %v140 = vld [vmem:[%s1 + $0xe0] sm:$0xff]
  %v141 = vld [vmem:[%s1 + $0xe8] sm:$0xff]
  %v142 = vld [vmem:[%s1 + $0xf0] sm:$0xff]
  %v143 = vld [vmem:[%s1 + $0xf8] sm:$0xff]
  %v144 = vld [vmem:[%s1 + $0x100] sm:$0xff]
  %v145 = vld [vmem:[%s1 + $0x108] sm:$0xff]
  %v146 = vld [vmem:[%s1 + $0x110] sm:$0xff]
  %v147 = vld [vmem:[%s1 + $0x118] sm:$0xff]
  %v148 = vld [vmem:[%s1 + $0x120] sm:$0xff]
  %v149 = vld [vmem:[%s1 + $0x128] sm:$0xff]
  %v150 = vld [vmem:[%s1 + $0x130] sm:$0xff]
  %v151 = vld [vmem:[%s1 + $0x138] sm:$0xff]
  %v152 = vld [vmem:[%s1 + $0x140] sm:$0xff]
  %v153 = vld [vmem:[%s1 + $0x148] sm:$0xff]
  %v154 = vld [vmem:[%s1 + $0x150] sm:$0xff]
  %v155 = vld [vmem:[%s1 + $0x158] sm:$0xff]
  %v156 = vld [vmem:[%s1 + $0x160] sm:$0xff]
  %v157 = vld [vmem:[%s1 + $0x168] sm:$0xff]
  %v158 = vld [vmem:[%s1 + $0x170] sm:$0xff]
  %v159 = vld [vmem:[%s1 + $0x178] sm:$0xff]
  %v160 = vld [vmem:[%s1 + $0x180] sm:$0xff]
  %v161 = vld [vmem:[%s1 + $0x188] sm:$0xff]
  %v162 = vld [vmem:[%s1 + $0x190] sm:$0xff]
  %v163 = vld [vmem:[%s1 + $0x198] sm:$0xff]
  %v164 = vld [vmem:[%s1 + $0x1a0] sm:$0xff]
  %v165 = vld [vmem:[%s1 + $0x1a8] sm:$0xff]
  %v166 = vld [vmem:[%s1 + $0x1b0] sm:$0xff]
  %v167 = vld [vmem:[%s1 + $0x1b8] sm:$0xff]
  %v168 = vld [vmem:[%s1 + $0x1c0] sm:$0xff]
  %v169 = vld [vmem:[%s1 + $0x1c8] sm:$0xff]
  %v170 = vld [vmem:[%s1 + $0x1d0] sm:$0xff]
  %v171 = vld [vmem:[%s1 + $0x1d8] sm:$0xff]
  %v172 = vld [vmem:[%s1 + $0x1e0] sm:$0xff]
  %v173 = vld [vmem:[%s1 + $0x1e8] sm:$0xff]
  %v174 = vld [vmem:[%s1 + $0x1f0] sm:$0xff]
  %v175 = vld [vmem:[%s1 + $0x1f8] sm:$0xff]
  %176 = vmatpush.msra.mxu0 %v127
  %177 = vmatpush.msra.mxu0 %v126
  %178 = vmatpush.msra.mxu0 %v125
  %179 = vmatpush.msra.mxu0 %v124
  %180 = vmatpush.msra.mxu0 %v123
  %181 = vmatpush.msra.mxu0 %v122
  %182 = vmatpush.msra.mxu0 %v121
  %183 = vmatpush.msra.mxu0 %v120
  %184 = vmatpush.msra.mxu0 %v119
  %185 = vmatpush.msra.mxu0 %v118
  %186 = vmatpush.msra.mxu0 %v117
  %187 = vmatpush.msra.mxu0 %v116
  %188 = vmatpush.msra.mxu0 %v115
  %189 = vmatpush.msra.mxu0 %v114
  %190 = vmatpush.msra.mxu0 %v113
  %191 = vmatpush.msra.mxu0 %v112
  %192 = vmatmul.f32.gmra.mxu0 %v104
  %v193 = vpop.f32.mrf.mxu0
  %v194 = vadd.f32 0.0, %v193
  %195 = vmatmul.f32.gmra.mxu0 %v108
  %v196 = vpop.f32.mrf.mxu0
  %v197 = vadd.f32 0.0, %v196
  %198 = vdwg.mxu0
  %199 = vmatpush.msra.mxu0 %v143
  %200 = vmatpush.msra.mxu0 %v142
  %201 = vmatpush.msra.mxu0 %v141
  %202 = vmatpush.msra.mxu0 %v140
  %203 = vmatpush.msra.mxu0 %v139
  %204 = vmatpush.msra.mxu0 %v138
  %205 = vmatpush.msra.mxu0 %v137
  %206 = vmatpush.msra.mxu0 %v136
  %207 = vmatpush.msra.mxu0 %v135
  %208 = vmatpush.msra.mxu0 %v134
  %209 = vmatpush.msra.mxu0 %v133
  %210 = vmatpush.msra.mxu0 %v132
  %211 = vmatpush.msra.mxu0 %v131
  %212 = vmatpush.msra.mxu0 %v130
  %213 = vmatpush.msra.mxu0 %v129
  %214 = vmatpush.msra.mxu0 %v128
  %215 = vmatmul.f32.gmra.mxu0 %v105
  %v216 = vpop.f32.mrf.mxu0
  %v217 = vadd.f32 %v194, %v216
  %218 = vmatmul.f32.gmra.mxu0 %v109
  %v219 = vpop.f32.mrf.mxu0
  %v220 = vadd.f32 %v197, %v219
  %221 = vdwg.mxu0
  %222 = vmatpush.msra.mxu0 %v159
  %223 = vmatpush.msra.mxu0 %v158
  %224 = vmatpush.msra.mxu0 %v157
  %225 = vmatpush.msra.mxu0 %v156
  %226 = vmatpush.msra.mxu0 %v155
  %227 = vmatpush.msra.mxu0 %v154
  %228 = vmatpush.msra.mxu0 %v153
  %229 = vmatpush.msra.mxu0 %v152
  %230 = vmatpush.msra.mxu0 %v151
  %231 = vmatpush.msra.mxu0 %v150
  %232 = vmatpush.msra.mxu0 %v149
  %233 = vmatpush.msra.mxu0 %v148
  %234 = vmatpush.msra.mxu0 %v147
  %235 = vmatpush.msra.mxu0 %v146
  %236 = vmatpush.msra.mxu0 %v145
  %237 = vmatpush.msra.mxu0 %v144
  %238 = vmatmul.f32.gmra.mxu0 %v106
  %v239 = vpop.f32.mrf.mxu0
  %v240 = vadd.f32 %v217, %v239
  %241 = vmatmul.f32.gmra.mxu0 %v110
  %v242 = vpop.f32.mrf.mxu0
  %v243 = vadd.f32 %v220, %v242
  %244 = vdwg.mxu0
  %245 = vmatpush.msra.mxu0 %v175
  %246 = vmatpush.msra.mxu0 %v174
  %247 = vmatpush.msra.mxu0 %v173
  %248 = vmatpush.msra.mxu0 %v172
  %249 = vmatpush.msra.mxu0 %v171
  %250 = vmatpush.msra.mxu0 %v170
  %251 = vmatpush.msra.mxu0 %v169
  %252 = vmatpush.msra.mxu0 %v168
  %253 = vmatpush.msra.mxu0 %v167
  %254 = vmatpush.msra.mxu0 %v166
  %255 = vmatpush.msra.mxu0 %v165
  %256 = vmatpush.msra.mxu0 %v164
  %257 = vmatpush.msra.mxu0 %v163
  %258 = vmatpush.msra.mxu0 %v162
  %259 = vmatpush.msra.mxu0 %v161
  %260 = vmatpush.msra.mxu0 %v160
  %261 = vmatmul.f32.gmra.mxu0 %v107
  %v262 = vpop.f32.mrf.mxu0
  %v263 = vadd.f32 %v240, %v262
  %264 = vmatmul.f32.gmra.mxu0 %v111
  %v265 = vpop.f32.mrf.mxu0
  %v266 = vadd.f32 %v243, %v265
  %267 = vdwg.mxu0
  %268 = vst [vmem:[%s3] sm:$0xff] %v263
  %269 = vst [vmem:[%s3 + $0x8] sm:$0xff] %v266
  // Predicated region
  $region14: #{set_max_pool2d.1} parent=0 // pred_check
    _
  $region15: #{set_max_pool2d.1} parent=0 // pred_check_branch
    %271 = sbr.rel (0) target = $region17
  $region16: #{set_max_pool2d.1} parent=0 // pred_region
    _
  $region17: #{set_max_pool2d.1} parent=0 // pred_fallthru
    _
  // Predicated region
  $region18: #{set_max_pool2d.1} parent=0 // pred_check
    _
  $region19: #{set_max_pool2d.1} parent=0 // pred_check_branch
    %273 = sbr.rel (0) target = $region21
  $region20: #{set_max_pool2d.1} parent=0 // pred_region
    _
  $region21: #{set_max_pool2d.1} parent=0 // pred_fallthru
    _

</llo_original>
